<compile_context>
chip_gen: v6e
topology: v6e:2x2x1
jax: 0.10.0
libtpu: 0.0.40
codegen_flags: <defaults>
</compile_context>

<pallas_src>
import functools

import jax
import jax.numpy as jnp
import numpy as np
from jax.experimental import pallas as pl
from jax.experimental.pallas import tpu as pltpu


def _round_up(x, m):
    return ((x + m - 1) // m) * m


# --------------------------------------------------------------------------- #
# Kernel
# --------------------------------------------------------------------------- #
def _rma_phase2_kernel(x_ref, w1_ref, b1_ref, wt_ref, bt_ref, out_ref, *, rows, feat):
    """One row tile:  relu(x @ W1 + b1) @ W_tail + b_tail.

    x_ref / out_ref may arrive in a lane-dense packed layout ((rows*feat)//128, 128)
    resp. ((rows*E)//128, 128); the reshapes below are no-ops in the unpacked case
    and in-register/VMEM relayouts in the packed case (XLU/VPU slots, which have
    slack in this memory-bound kernel).
    """
    x = x_ref[...]
    if x.shape != (rows, feat):
        x = x.reshape(rows, feat)
    h = jnp.dot(x, w1_ref[...], preferred_element_type=jnp.float32)
    h = jnp.maximum(h + b1_ref[...], 0.0)            # bias/ReLU in f32 (v5e VPU has no bf16)
    z = jnp.dot(h, wt_ref[...], preferred_element_type=jnp.float32)  # tail kept in f32
    z = (z + bt_ref[...]).astype(out_ref.dtype)
    if z.shape != out_ref.shape:
        z = z.reshape(out_ref.shape)                  # lane-dense (.., 128) store layout
    out_ref[...] = z


# --------------------------------------------------------------------------- #
# Wrapper
# --------------------------------------------------------------------------- #
def fold_tail_params(params):
    """Collapse the post-ReLU linear chain into a single (128, E) weight and (1, E) bias.

    Exact in f32: W_tail = w2 @ wc1 @ wc2 @ wc3 @ wf,
                  b_tail = ((((b2 @ wc1 + bc1) @ wc2 + bc2) @ wc3 + bc3) @ wf + bf).
    """
    w_tail = params["w2"]
    b_tail = params["b2"]
    for wk, bk in (("wc1", "bc1"), ("wc2", "bc2"), ("wc3", "bc3"), ("wf", "bf")):
        b_tail = b_tail @ params[wk] + params[bk]
        w_tail = w_tail @ params[wk]
    return w_tail, b_tail


_VMEM_BLOCK_BUDGET = 20 * 1024 * 1024   # streamed-block budget inside the 32 MiB scoped VMEM


def _choose_tile(N, T, E, row_tile, pack_in, pack_out, in_itemsize, out_itemsize):
    """Pick (row_tile, grid): large, VMEM-budgeted, even grid when split (v7x balance)."""
    align = 1024 if (pack_in or pack_out) else 8
    # Double-buffered per-row VMEM cost of the streamed x / out blocks.  Unpacked blocks
    # are lane-padded to 128 in VMEM; packed blocks are dense.  Weights are tiny & resident.
    bpr_in = T * in_itemsize if pack_in else _round_up(T, 128) * in_itemsize
    bpr_out = E * out_itemsize if pack_out else _round_up(E, 128) * out_itemsize
    per_row = 2 * (bpr_in + bpr_out)
    rt = max(align, (_VMEM_BLOCK_BUDGET // per_row) // align * align)
    rt = min(rt, _round_up(row_tile, align))
    if rt >= N:
        return N, 1                       # one block == full arrays (always a legal block)
    grid = pl.cdiv(N, rt)
    if grid % 2:                          # prefer an even grid: balances v7x's two TCs
        rt = _round_up(pl.cdiv(N, grid + 1), align)
        grid = pl.cdiv(N, rt)
    return rt, grid


def _launch(x2, w1, b1, wt, bt, *, N, T, E, rt, grid, pack_in, pack_out, out_dtype):
    kernel = functools.partial(_rma_phase2_kernel, rows=rt, feat=T)

    if pack_in:          # lane-dense HBM layout; the wrapper reshape is free (row-major)
        x_arr = x2.reshape((N * T) // 128, 128)
        x_spec = pl.BlockSpec(((rt * T) // 128, 128), lambda i: (i, 0))
    else:
        x_arr = x2
        x_spec = pl.BlockSpec((rt, T), lambda i: (i, 0))

    if pack_out:
        out_shape = jax.ShapeDtypeStruct(((N * E) // 128, 128), out_dtype)
        out_spec = pl.BlockSpec(((rt * E) // 128, 128), lambda i: (i, 0))
    else:
        out_shape = jax.ShapeDtypeStruct((N, E), out_dtype)
        out_spec = pl.BlockSpec((rt, E), lambda i: (i, 0))

    # Weights/biases: full-array blocks with a constant index map -> VMEM-resident across
    # all grid steps; only x and out stream from/to HBM.
    full = lambda a: pl.BlockSpec(a.shape, lambda i: (0, 0))

    out = pl.pallas_call(
        kernel,
        out_shape=out_shape,
        grid_spec=pltpu.PrefetchScalarGridSpec(
            num_scalar_prefetch=0,
            grid=(grid,),
            in_specs=[x_spec, full(w1), full(b1), full(wt), full(bt)],
            out_specs=out_spec,
        ),
        compiler_params=pltpu.CompilerParams(
            dimension_semantics=("parallel",),
            vmem_limit_bytes=32 * 1024 * 1024,
        ),
    )(x_arr, w1, b1, wt, bt)
    return out


# Flipped off (once, process-wide) if the running Mosaic version rejects the
# sub-128-lane in-kernel relayouts; the kernel then runs in the plain layout.
_PACK_IN_OK = True
_PACK_OUT_OK = True
_PACK_VALIDATED = False


def rma_phase2_forward(data, params, *, row_tile=16384, compute_dtype=None,
                       out_dtype=None, pack_io=True):
    """data: (B, S, T).  Returns (B, S, E).

    compute_dtype=None (default) keeps the matmul operands in data.dtype and avoids any
    extra HBM pass over x; pass jnp.bfloat16 explicitly only if the cast is worth it
    (accumulation stays f32 either way).  out_dtype defaults to data.dtype.
    """
    global _PACK_IN_OK, _PACK_OUT_OK, _PACK_VALIDATED
    B, S, T = data.shape
    E = params["wf"].shape[1]
    N = B * S

    cdt = np.dtype(data.dtype) if compute_dtype is None else np.dtype(compute_dtype)
    odt = np.dtype(data.dtype) if out_dtype is None else np.dtype(out_dtype)

    # Fold the affine tail once in f32 (exact).
    w_tail, b_tail = fold_tail_params(params)

    x2 = data.reshape(N, T)
    if x2.dtype != cdt:
        # Explicit cast costs one HBM pass over x; the default path never takes it.
        x2 = x2.astype(cdt)
    w1 = params["w1"].astype(cdt)
    b1 = params["b1"].astype(jnp.float32)
    wt = w_tail.astype(jnp.float32)     # tail matmul stays f32: tiny weight, non-bottleneck
    bt = b_tail.astype(jnp.float32)

    # Lane-dense packed HBM layouts (x as (N*T/128,128), out as (N*E/128,128)): every
    # DMA / vld / vst carries 128 full lanes and the (rt, T)/(rt, E) lane padding in VMEM
    # disappears.  Both are plain row-major reshapes, so the wrapper conversions are free.
    want_in = pack_io and N >= 1024 and (N * T) % 128 == 0
    want_out = pack_io and N >= 1024 and (N * E) % 128 == 0

    while True:
        pi = want_in and _PACK_IN_OK
        po = want_out and _PACK_OUT_OK
        rt, grid = _choose_tile(N, T, E, row_tile, pi, po, cdt.itemsize, odt.itemsize)
        try:
            out = _launch(x2, w1, b1, wt, bt, N=N, T=T, E=E, rt=rt, grid=grid,
                          pack_in=pi, pack_out=po, out_dtype=odt)
            if (pi or po) and not _PACK_VALIDATED:
                jax.block_until_ready(out)   # surface any packed-path failure right here
                _PACK_VALIDATED = True
            break
        except Exception:
            # Mosaic support for sub-128-lane reshapes/relayouts varies across versions;
            # degrade to the plain layout instead of failing the forward pass.
            if pi:
                _PACK_IN_OK = False
            elif po:
                _PACK_OUT_OK = False
            else:
                raise

    return out.reshape(B, S, E)


# --------------------------------------------------------------------------- #
# Synthetic parameters + pure-JAX reference
# --------------------------------------------------------------------------- #
def init_params(key, T, E):
    """Deterministic synthetic parameters (PyTorch shapes, transposed to (in, out))."""
    ks = jax.random.split(key, 12)
    scale = 0.1

    def w(k, shape):
        return scale * jax.random.normal(k, shape, dtype=jnp.float32)

    return {
        # nn.LazyLinear(128): weight (128, T) -> stored transposed (T, 128)
        "w1": w(ks[0], (T, 128)), "b1": w(ks[1], (1, 128)),
        # nn.Linear(128, 32)
        "w2": w(ks[2], (128, 32)), "b2": w(ks[3], (1, 32)),
        # three Conv1d(32, 32, kernel_size=1) -> (out, in, 1) collapsed to (in, out)
        "wc1": w(ks[4], (32, 32)), "bc1": w(ks[5], (1, 32)),
        "wc2": w(ks[6], (32, 32)), "bc2": w(ks[7], (1, 32)),
        "wc3": w(ks[8], (32, 32)), "bc3": w(ks[9], (1, 32)),
        # final LazyLinear(E)
        "wf": w(ks[10], (32, E)), "bf": w(ks[11], (1, E)),
    }


def _reference_forward(data, p):
    """Pure-JAX reference of the unfused PyTorch forward."""
    B, S, T = data.shape
    x = data.reshape(B * S, T)
    h = jnp.maximum(x @ p["w1"] + p["b1"], 0.0)
    h = h @ p["w2"] + p["b2"]
    h = h @ p["wc1"] + p["bc1"]
    h = h @ p["wc2"] + p["bc2"]
    h = h @ p["wc3"] + p["bc3"]
    z = h @ p["wf"] + p["bf"]
    return z.reshape(B, S, -1)


if __name__ == "__main__":
    T, E = 16, 8          # time horizon, arch_config.encoder.encoded_extrinsic_size
    key = jax.random.PRNGKey(0)
    kp, k1, k2, k3, k4 = jax.random.split(key, 5)
    params = init_params(kp, T, E)

    def check(data, atol, rtol, **kw):
        z = jax.block_until_ready(rma_phase2_forward(data, params, **kw))
        z_ref = _reference_forward(data, params)
        assert z.shape == z_ref.shape, (z.shape, z_ref.shape)
        assert jnp.allclose(z, z_ref, atol=atol, rtol=rtol), float(jnp.abs(z - z_ref).max())
        return z

    # Small / ragged shapes (plain layout, single full-array block, no padding).
    check(jax.random.normal(k1, (2, 8, T), dtype=jnp.float32), 2e-5, 2e-5)
    check(jax.random.normal(k2, (3, 7, T), dtype=jnp.float32), 2e-5, 2e-5)

    # Larger shapes: lane-dense packed input/output layouts, single-tile and
    # multi-tile (partial final block) grids.
    check(jax.random.normal(k3, (16, 128, T), dtype=jnp.float32), 2e-5, 2e-5)
    check(jax.random.normal(k4, (8, 258, T), dtype=jnp.float32), 2e-5, 2e-5, row_tile=1024)

    # bf16 matmul operands for x/W1 (f32 accumulation, f32 tail) fast path.
    d = jax.random.normal(k3, (16, 128, T), dtype=jnp.float32)
    z_ref = _reference_forward(d, params)
    z_bf16 = jax.block_until_ready(
        rma_phase2_forward(d, params, compute_dtype=jnp.bfloat16))
    assert jnp.allclose(z_bf16, z_ref, atol=1e-2, rtol=5e-2)

    print("KERNEL_OK")
</pallas_src>

<mosaic_0001>
module attributes {stable_mosaic.version = 11 : i64} {
  func.func @_rma_phase2_kernel(%arg0: i32, %arg1: memref<16x16xf32, #tpu.memory_space<vmem>>, %arg2: memref<16x128xf32, #tpu.memory_space<vmem>>, %arg3: memref<1x128xf32, #tpu.memory_space<vmem>>, %arg4: memref<128x8xf32, #tpu.memory_space<vmem>>, %arg5: memref<1x8xf32, #tpu.memory_space<vmem>>, %arg6: memref<16x8xf32, #tpu.memory_space<vmem>>) attributes {dimension_semantics = [#tpu.dimension_semantics<parallel>], iteration_bounds = array<i64: 1>, scalar_prefetch = 0 : i64, scratch_operands = 0 : i64, tpu.core_type = #tpu.core_type<tc>, window_params = [{transform_indices = @transform_0, window_bounds = array<i64: 16, 16>}, {pipeline_mode = #tpu.pipeline_mode<synchronous>, transform_indices = @transform_1, window_bounds = array<i64: 16, 128>}, {pipeline_mode = #tpu.pipeline_mode<synchronous>, transform_indices = @transform_2, window_bounds = array<i64: 1, 128>}, {pipeline_mode = #tpu.pipeline_mode<synchronous>, transform_indices = @transform_3, window_bounds = array<i64: 128, 8>}, {pipeline_mode = #tpu.pipeline_mode<synchronous>, transform_indices = @transform_4, window_bounds = array<i64: 1, 8>}, {transform_indices = @transform_5, window_bounds = array<i64: 16, 8>}]} {
    %c0 = arith.constant 0 : index
    %c0_0 = arith.constant 0 : index
    %0 = vector.load %arg1[%c0, %c0_0] : memref<16x16xf32, #tpu.memory_space<vmem>>, vector<16x16xf32>
    %c0_1 = arith.constant 0 : index
    %c0_2 = arith.constant 0 : index
    %1 = vector.load %arg2[%c0_1, %c0_2] : memref<16x128xf32, #tpu.memory_space<vmem>>, vector<16x128xf32>
    %cst = arith.constant dense<0.000000e+00> : vector<16x128xf32>
    %2 = tpu.matmul %0, %1, %cst {dimension_numbers = #tpu.dot_dimension_numbers<[1], [0], [0], [1], [0, 0, 1, 1], [], []>} : vector<16x16xf32>, vector<16x128xf32>, vector<16x128xf32> -> vector<16x128xf32>
    %c0_3 = arith.constant 0 : index
    %c0_4 = arith.constant 0 : index
    %3 = vector.load %arg3[%c0_3, %c0_4] : memref<1x128xf32, #tpu.memory_space<vmem>>, vector<1x128xf32>
    %4 = vector.broadcast %3 : vector<1x128xf32> to vector<16x128xf32>
    %5 = arith.addf %2, %4 : vector<16x128xf32>
    %cst_5 = arith.constant 0.000000e+00 : f32
    %6 = vector.broadcast %cst_5 : f32 to vector<16x128xf32>
    %7 = arith.maximumf %5, %6 : vector<16x128xf32>
    %c0_6 = arith.constant 0 : index
    %c0_7 = arith.constant 0 : index
    %8 = vector.load %arg4[%c0_6, %c0_7] : memref<128x8xf32, #tpu.memory_space<vmem>>, vector<128x8xf32>
    %cst_8 = arith.constant dense<0.000000e+00> : vector<16x8xf32>
    %9 = tpu.matmul %7, %8, %cst_8 {dimension_numbers = #tpu.dot_dimension_numbers<[1], [0], [0], [1], [0, 0, 1, 1], [], []>} : vector<16x128xf32>, vector<128x8xf32>, vector<16x8xf32> -> vector<16x8xf32>
    %c0_9 = arith.constant 0 : index
    %c0_10 = arith.constant 0 : index
    %10 = vector.load %arg5[%c0_9, %c0_10] : memref<1x8xf32, #tpu.memory_space<vmem>>, vector<1x8xf32>
    %11 = vector.broadcast %10 : vector<1x8xf32> to vector<16x8xf32>
    %12 = arith.addf %9, %11 : vector<16x8xf32>
    %c0_11 = arith.constant 0 : index
    %c0_12 = arith.constant 0 : index
    %13 = vector.load %arg6[%c0_11, %c0_12] : memref<16x8xf32, #tpu.memory_space<vmem>>, vector<16x8xf32>
    tpu.vector_store %arg6[%c0_11, %c0_12], %12 {strides = array<i32>} : memref<16x8xf32, #tpu.memory_space<vmem>>, vector<16x8xf32>,
    return
  }
  func.func @transform_0(%arg0: i32) -> (i32, i32) {
    %c0_i32 = arith.constant 0 : i32
    %c0_i32_0 = arith.constant 0 : i32
    return %arg0, %c0_i32 : i32, i32
  }
  func.func @transform_1(%arg0: i32) -> (i32, i32) {
    %c0_i32 = arith.constant 0 : i32
    %c0_i32_0 = arith.constant 0 : i32
    %c0_i32_1 = arith.constant 0 : i32
    return %c0_i32, %c0_i32_0 : i32, i32
  }
  func.func @transform_2(%arg0: i32) -> (i32, i32) {
    %c0_i32 = arith.constant 0 : i32
    %c0_i32_0 = arith.constant 0 : i32
    %c0_i32_1 = arith.constant 0 : i32
    return %c0_i32, %c0_i32_0 : i32, i32
  }
  func.func @transform_3(%arg0: i32) -> (i32, i32) {
    %c0_i32 = arith.constant 0 : i32
    %c0_i32_0 = arith.constant 0 : i32
    %c0_i32_1 = arith.constant 0 : i32
    return %c0_i32, %c0_i32_0 : i32, i32
  }
  func.func @transform_4(%arg0: i32) -> (i32, i32) {
    %c0_i32 = arith.constant 0 : i32
    %c0_i32_0 = arith.constant 0 : i32
    %c0_i32_1 = arith.constant 0 : i32
    return %c0_i32, %c0_i32_0 : i32, i32
  }
  func.func @transform_5(%arg0: i32) -> (i32, i32) {
    %c0_i32 = arith.constant 0 : i32
    %c0_i32_0 = arith.constant 0 : i32
    return %arg0, %c0_i32 : i32, i32
  }
}

</mosaic_0001>

<llo_original>
// kernel: tpu_custom_call.1
$region0: #{tpu_custom_call.1}
  #allocation0 [shape = 'u32[]', space=smem, size = 0x4, offset = 0x4, fixed_abs, tag = 'smem constant byte address 0x4 - core index']
  #allocation1 [shape = 'u32[144,128]{1,0:T(1,128)}', space=vmem, size = 0x12000, scoped, tag = 'internal scratch']
  %s0 = inlined_call_operand.vmem [shape: f32[16,16], index: 0, kind: input, shape index: {}]
  %s1 = inlined_call_operand.vmem [shape: f32[16,128], index: 1, kind: input, shape index: {}]
  %s2 = inlined_call_operand.vmem [shape: f32[1,128], index: 2, kind: input, shape index: {}]
  %s3 = inlined_call_operand.vmem [shape: f32[128,8], index: 3, kind: input, shape index: {}]
  %s4 = inlined_call_operand.vmem [shape: f32[1,8], index: 4, kind: input, shape index: {}]
  %s5 = inlined_call_operand.vmem [shape: f32[16,8], index: 5, kind: output, shape index: {}]
  %s6 = sld [smem:[#allocation0]]
  $region30: #{tpu_custom_call.1} parent=0
    _
  %s8 = ssub.s32 1, %s6
  %s9 = scalar_select 0, %s8, %s6
  // Predicated region
  $region2: #{tpu_custom_call.1} parent=0 // pred_check
    _
  $region3: #{tpu_custom_call.1} parent=0 // pred_check_branch
    %11 = sbr.rel (0) target = $region5
  $region4: #{tpu_custom_call.1} parent=0 // pred_region
    _
  $region5: #{tpu_custom_call.1} parent=0 // pred_fallthru
    _
  // Predicated region
  $region6: #{tpu_custom_call.1} parent=0 // pred_check
    _
  $region7: #{tpu_custom_call.1} parent=0 // pred_check_branch
    %13 = sbr.rel (0) target = $region9
  $region8: #{tpu_custom_call.1} parent=0 // pred_region
    _
  $region9: #{tpu_custom_call.1} parent=0 // pred_fallthru
    _
  // Predicated region
  $region10: #{tpu_custom_call.1} parent=0 // pred_check
    _
  $region11: #{tpu_custom_call.1} parent=0 // pred_check_branch
    %15 = sbr.rel (0) target = $region13
  $region12: #{tpu_custom_call.1} parent=0 // pred_region
    _
  $region13: #{tpu_custom_call.1} parent=0 // pred_fallthru
    _
  // Predicated region
  $region14: #{tpu_custom_call.1} parent=0 // pred_check
    _
  $region15: #{tpu_custom_call.1} parent=0 // pred_check_branch
    %17 = sbr.rel (0) target = $region17
  $region16: #{tpu_custom_call.1} parent=0 // pred_region
    _
  $region17: #{tpu_custom_call.1} parent=0 // pred_fallthru
    _
  // Predicated region
  $region18: #{tpu_custom_call.1} parent=0 // pred_check
    _
  $region19: #{tpu_custom_call.1} parent=0 // pred_check_branch
    %19 = sbr.rel (0) target = $region21
  $region20: #{tpu_custom_call.1} parent=0 // pred_region
    _
  $region21: #{tpu_custom_call.1} parent=0 // pred_fallthru
    _
  %v20 = vld [vmem:[%s0] sm:$0xff]
  %v21 = vld [vmem:[%s0 + $0x8] sm:$0xff]
  %v22 = vld [vmem:[%s1] sm:$0xff]
  %v23 = vld [vmem:[%s1 + $0x8] sm:$0xff]
  %v24 = vld [vmem:[%s2] sm:$0x1]
  %v26 = vlaneseq
  %v27 = vshrl.u32 %v26, 7
  %v28 = vsub.s32 0, %v27
  %v29 = vrot.slane %v24, %v28
  %vm31 = vcmask 130048
  %v33 = vsel %vm31, %v20, 0
  %v36 = vsel %vm31, %v21, 0
  %38 = vmatprep.subr.mxu0 0.0
  %39 = vmatpush1.msra.mxu0 0.0
  %40 = vmatprep.subr.mxu0 0.0
  %41 = vmatpush1.msra.mxu0 0.0
  %42 = vmatprep.subr.mxu0 0.0
  %43 = vmatpush1.msra.mxu0 0.0
  %44 = vmatprep.subr.mxu0 0.0
  %45 = vmatpush1.msra.mxu0 0.0
  %46 = vmatprep.subr.mxu0 0.0
  %47 = vmatpush1.msra.mxu0 0.0
  %48 = vmatprep.subr.mxu0 0.0
  %49 = vmatpush1.msra.mxu0 0.0
  %50 = vmatprep.subr.mxu0 0.0
  %51 = vmatpush1.msra.mxu0 0.0
  %52 = vmatprep.subr.mxu0 0.0
  %53 = vmatpush1.msra.mxu0 0.0
  %54 = vmatprep.subr.mxu0 0.0
  %55 = vmatpush1.msra.mxu0 0.0
  %56 = vmatprep.subr.mxu0 0.0
  %57 = vmatpush1.msra.mxu0 0.0
  %58 = vmatprep.subr.mxu0 0.0
  %59 = vmatpush1.msra.mxu0 0.0
  %60 = vmatprep.subr.mxu0 0.0
  %61 = vmatpush1.msra.mxu0 0.0
  %62 = vmatprep.subr.mxu0 0.0
  %63 = vmatpush1.msra.mxu0 0.0
  %64 = vmatprep.subr.mxu0 0.0
  %65 = vmatpush1.msra.mxu0 0.0
  %66 = vmatprep.subr.mxu0 0.0
  %67 = vmatpush1.msra.mxu0 %v23
  %68 = vmatprep.subr.mxu0 0.0
  %69 = vmatpush1.msra.mxu0 %v22
  %70 = vmatprep.subr.mxu0 0.0
  %71 = vmatpush2.msra.mxu0 0.0
  %72 = vmatprep.subr.mxu0 0.0
  %73 = vmatpush2.msra.mxu0 0.0
  %74 = vmatprep.subr.mxu0 0.0
  %75 = vmatpush2.msra.mxu0 0.0
  %76 = vmatprep.subr.mxu0 0.0
  %77 = vmatpush2.msra.mxu0 0.0
  %78 = vmatprep.subr.mxu0 0.0
  %79 = vmatpush2.msra.mxu0 0.0
  %80 = vmatprep.subr.mxu0 0.0
  %81 = vmatpush2.msra.mxu0 0.0
  %82 = vmatprep.subr.mxu0 0.0
  %83 = vmatpush2.msra.mxu0 0.0
  %84 = vmatprep.subr.mxu0 0.0
  %85 = vmatpush2.msra.mxu0 0.0
  %86 = vmatprep.subr.mxu0 0.0
  %87 = vmatpush2.msra.mxu0 0.0
  %88 = vmatprep.subr.mxu0 0.0
  %89 = vmatpush2.msra.mxu0 0.0
  %90 = vmatprep.subr.mxu0 0.0
  %91 = vmatpush2.msra.mxu0 0.0
  %92 = vmatprep.subr.mxu0 0.0
  %93 = vmatpush2.msra.mxu0 0.0
  %94 = vmatprep.subr.mxu0 0.0
  %95 = vmatpush2.msra.mxu0 0.0
  %96 = vmatprep.subr.mxu0 0.0
  %97 = vmatpush2.msra.mxu0 0.0
  %98 = vmatprep.subr.mxu0 0.0
  %99 = vmatpush2.msra.mxu0 0.0
  %100 = vmatprep.subr.mxu0 0.0
  %101 = vmatpush2.msra.mxu0 0.0
  %102 = vmatprep.mubr.f32.mxu0 0.0
  %103 = vmatmul.mubr.f32.gmra.mxu0 %v33
  %v104 = vpop.f32.mrf.mxu0
  %v105 = vadd.f32 %v29, %v104
  %v106 = vpop.f32.mrf.mxu0
  %107 = vmatprep.mubr.f32.mxu0 0.0
  %108 = vmatmul.mubr.f32.gmra.mxu0 %v36
  %v109 = vpop.f32.mrf.mxu0
  %v110 = vadd.f32 %v29, %v109
  %v111 = vpop.f32.mrf.mxu0
  %112 = vdwg.mxu0
  %v113 = vmax.f32 %v105, 0.0
  %v114 = vmax.f32 %v110, 0.0
  %v115 = vld [vmem:[%s3] sm:$0xff]
  %v116 = vld [vmem:[%s3 + $0x8] sm:$0xff]
  %v117 = vld [vmem:[%s3 + $0x10] sm:$0xff]
  %v118 = vld [vmem:[%s3 + $0x18] sm:$0xff]
  %v119 = vld [vmem:[%s3 + $0x20] sm:$0xff]
  %v120 = vld [vmem:[%s3 + $0x28] sm:$0xff]
  %v121 = vld [vmem:[%s3 + $0x30] sm:$0xff]
  %v122 = vld [vmem:[%s3 + $0x38] sm:$0xff]
  %v123 = vld [vmem:[%s3 + $0x40] sm:$0xff]
  %v124 = vld [vmem:[%s3 + $0x48] sm:$0xff]
  %v125 = vld [vmem:[%s3 + $0x50] sm:$0xff]
  %v126 = vld [vmem:[%s3 + $0x58] sm:$0xff]
  %v127 = vld [vmem:[%s3 + $0x60] sm:$0xff]
  %v128 = vld [vmem:[%s3 + $0x68] sm:$0xff]
  %v129 = vld [vmem:[%s3 + $0x70] sm:$0xff]
  %v130 = vld [vmem:[%s3 + $0x78] sm:$0xff]
  %v131 = vld [vmem:[%s4] sm:$0x1]
  %v133 = vlaneseq
  %v134 = vshrl.u32 %v133, 7
  %v135 = vsub.s32 0, %v134
  %v136 = vrot.slane %v131, %v135
  %138 = vmatprep.subr.mxu0 0.0
  %139 = vmatpush1.msra.mxu0 %v130
  %140 = vmatprep.subr.mxu0 0.0
  %141 = vmatpush1.msra.mxu0 %v129
  %142 = vmatprep.subr.mxu0 0.0
  %143 = vmatpush1.msra.mxu0 %v128
  %144 = vmatprep.subr.mxu0 0.0
  %145 = vmatpush1.msra.mxu0 %v127
  %146 = vmatprep.subr.mxu0 0.0
  %147 = vmatpush1.msra.mxu0 %v126
  %148 = vmatprep.subr.mxu0 0.0
  %149 = vmatpush1.msra.mxu0 %v125
  %150 = vmatprep.subr.mxu0 0.0
  %151 = vmatpush1.msra.mxu0 %v124
  %152 = vmatprep.subr.mxu0 0.0
  %153 = vmatpush1.msra.mxu0 %v123
  %154 = vmatprep.subr.mxu0 0.0
  %155 = vmatpush1.msra.mxu0 %v122
  %156 = vmatprep.subr.mxu0 0.0
  %157 = vmatpush1.msra.mxu0 %v121
  %158 = vmatprep.subr.mxu0 0.0
  %159 = vmatpush1.msra.mxu0 %v120
  %160 = vmatprep.subr.mxu0 0.0
  %161 = vmatpush1.msra.mxu0 %v119
  %162 = vmatprep.subr.mxu0 0.0
  %163 = vmatpush1.msra.mxu0 %v118
  %164 = vmatprep.subr.mxu0 0.0
  %165 = vmatpush1.msra.mxu0 %v117
  %166 = vmatprep.subr.mxu0 0.0
  %167 = vmatpush1.msra.mxu0 %v116
  %168 = vmatprep.subr.mxu0 0.0
  %169 = vmatpush1.msra.mxu0 %v115
  %170 = vmatprep.subr.mxu0 0.0
  %171 = vmatpush2.msra.mxu0 0.0
  %172 = vmatprep.subr.mxu0 0.0
  %173 = vmatpush2.msra.mxu0 0.0
  %174 = vmatprep.subr.mxu0 0.0
  %175 = vmatpush2.msra.mxu0 0.0
  %176 = vmatprep.subr.mxu0 0.0
  %177 = vmatpush2.msra.mxu0 0.0
  %178 = vmatprep.subr.mxu0 0.0
  %179 = vmatpush2.msra.mxu0 0.0
  %180 = vmatprep.subr.mxu0 0.0
  %181 = vmatpush2.msra.mxu0 0.0
  %182 = vmatprep.subr.mxu0 0.0
  %183 = vmatpush2.msra.mxu0 0.0
  %184 = vmatprep.subr.mxu0 0.0
  %185 = vmatpush2.msra.mxu0 0.0
  %186 = vmatprep.subr.mxu0 0.0
  %187 = vmatpush2.msra.mxu0 0.0
  %188 = vmatprep.subr.mxu0 0.0
  %189 = vmatpush2.msra.mxu0 0.0
  %190 = vmatprep.subr.mxu0 0.0
  %191 = vmatpush2.msra.mxu0 0.0
  %192 = vmatprep.subr.mxu0 0.0
  %193 = vmatpush2.msra.mxu0 0.0
  %194 = vmatprep.subr.mxu0 0.0
  %195 = vmatpush2.msra.mxu0 0.0
  %196 = vmatprep.subr.mxu0 0.0
  %197 = vmatpush2.msra.mxu0 0.0
  %198 = vmatprep.subr.mxu0 0.0
  %199 = vmatpush2.msra.mxu0 0.0
  %200 = vmatprep.subr.mxu0 0.0
  %201 = vmatpush2.msra.mxu0 0.0
  %202 = vmatprep.mubr.f32.mxu0 0.0
  %203 = vmatmul.mubr.f32.gmra.mxu0 %v113
  %v204 = vpop.f32.mrf.mxu0
  %v205 = vadd.f32 %v136, %v204
  %v206 = vpop.f32.mrf.mxu0
  %207 = vmatprep.mubr.f32.mxu0 0.0
  %208 = vmatmul.mubr.f32.gmra.mxu0 %v114
  %v209 = vpop.f32.mrf.mxu0
  %v210 = vadd.f32 %v136, %v209
  %v211 = vpop.f32.mrf.mxu0
  %212 = vdwg.mxu0
  %vm213 = vcmask 64512
  %214 = vst.msk [vmem:[%s5] sm:$0xff] %vm213, %v205
  %215 = vst.msk [vmem:[%s5 + $0x8] sm:$0xff] %vm213, %v210
  // Predicated region
  $region22: #{tpu_custom_call.1} parent=0 // pred_check
    _
  $region23: #{tpu_custom_call.1} parent=0 // pred_check_branch
    %217 = sbr.rel (0) target = $region25
  $region24: #{tpu_custom_call.1} parent=0 // pred_region
    _
  $region25: #{tpu_custom_call.1} parent=0 // pred_fallthru
    _
  // Predicated region
  $region26: #{tpu_custom_call.1} parent=0 // pred_check
    _
  $region27: #{tpu_custom_call.1} parent=0 // pred_check_branch
    %219 = sbr.rel (0) target = $region29
  $region28: #{tpu_custom_call.1} parent=0 // pred_region
    _
  $region29: #{tpu_custom_call.1} parent=0 // pred_fallthru
    _

</llo_original>
